<compile_context>
chip_gen: v7x
topology: tpu7x:2x2x1
jax: 0.10.0
libtpu: 0.0.40
codegen_flags: <defaults>
</compile_context>

<pallas_src>
import jax
import jax.numpy as jnp
from jax.experimental import pallas as pl
from jax.experimental.pallas import tpu as pltpu


def _make_divisible(ch, divisor=8, min_ch=None):
    if min_ch is None:
        min_ch = divisor
    new_ch = max(min_ch, int(ch + divisor / 2) // divisor * divisor)
    if new_ch < 0.9 * ch:
        new_ch += divisor
    return new_ch


def _se_kernel(x_ref, b_ref, bt_ref, w1t_ref, b1_ref, w2t_ref, b2_ref, o_ref):
    """x_ref/o_ref: (NB, C*L) native dtype.
    b_ref: (C*L, C) native dtype, nonzeros = 1/L (mean folded in).
    bt_ref: (C, C*L) native dtype, 0/1 selection.
    w1t: (C, Sc) f32, b1: (1, Sc) f32, w2t: (Sc, C) f32, b2: (1, C) f32."""
    x = x_ref[...]                                               # (NB, CL) native dtype

    # Global average pool over L for every (n, c): (NB, CL) @ (CL, C).
    # Native-dtype MXU operands, f32 accumulation; 1/L is folded into b_ref.
    pooled = jnp.dot(x, b_ref[...], preferred_element_type=jnp.float32)      # (NB, C) f32

    # fc1 (1x1 conv) + ReLU, batched over N:  (NB, C) @ (C, Sc)
    s1 = jnp.dot(pooled, w1t_ref[...], preferred_element_type=jnp.float32)
    s1 = jnp.maximum(s1 + b1_ref[...], 0.0)                      # (NB, Sc) f32

    # fc2 (1x1 conv) + hardsigmoid:  (NB, Sc) @ (Sc, C)
    s2 = jnp.dot(s1, w2t_ref[...], preferred_element_type=jnp.float32) + b2_ref[...]
    scale = jnp.clip(s2 * (1.0 / 6.0) + 0.5, 0.0, 1.0)           # (NB, C) f32

    # Broadcast the per-(n, c) scale back over L (each Bt column has exactly
    # one nonzero, so this is an exact selection), cast the scale down to the
    # slab dtype, and apply without ever upcasting x.
    scale_flat = jnp.dot(scale.astype(x.dtype), bt_ref[...],
                         preferred_element_type=jnp.float32)     # (NB, CL) f32
    o_ref[...] = scale_flat.astype(o_ref.dtype) * x              # native-dtype multiply


def squeeze_excitation(x, w1, b1, w2, b2, *, batch_block=None):
    """SqueezeExcitation forward.

    x: (N, C, L); w1: (Sc, C); b1: (Sc,); w2: (C, Sc); b2: (C,).
    batch_block: samples per grid step. Default: all of N (single invocation;
    best on v5e/v6e and at small N on v7x). Only split across v7x's two
    TensorCores when N is large (>= 16) and batch_block is a multiple of 8,
    sized so 2*2*nb*C*L*itemsize plus the selection matrices stays well under
    v7x's 64 MiB VMEM.
    """
    N, C, L = x.shape
    Sc = w1.shape[0]
    CL = C * L
    dtype = x.dtype
    itemsize = jnp.dtype(dtype).itemsize

    # Guard the selection-matrix footprint (each is C x C*L). For large C
    # switch to a two-phase L-grid structure instead of growing B/Bt.
    sel_bytes = 2 * C * CL * itemsize
    assert sel_bytes <= (8 << 20), (
        "selection-matrix footprint too large for VMEM; use a two-phase "
        "(accumulate-pool / apply-scale) L-grid kernel for this channel count")

    nb = N if batch_block is None else batch_block
    assert N % nb == 0, "batch_block must divide the batch size"
    assert nb == N or nb % 8 == 0, (
        "batch_block must be the full batch or a multiple of 8 to keep a "
        "clean sublane tiling on the (nb, C*L) block")

    # Lane-dense slab: contiguous (free) reshape, last dim = C*L (>= 128 here).
    x2 = x.reshape(N, CL)

    # Channel-selection matrices in the slab dtype.
    #   B [j, c] = 1/L  iff  j // L == c   (mean over L folded in)  -> (CL, C)
    #   Bt[c, j] = 1    iff  j // L == c                            -> (C, CL)
    ch_of_j = jnp.arange(CL, dtype=jnp.int32) // L
    ch_ids = jnp.arange(C, dtype=jnp.int32)
    B = (ch_of_j[:, None] == ch_ids[None, :]).astype(dtype) * jnp.asarray(1.0 / L, dtype)
    Bt = (ch_ids[:, None] == ch_of_j[None, :]).astype(dtype)

    # Small FC weights stay f32.
    w1t = jnp.transpose(w1).astype(jnp.float32)      # (C, Sc)
    w2t = jnp.transpose(w2).astype(jnp.float32)      # (Sc, C)
    b1r = b1.reshape(1, Sc).astype(jnp.float32)
    b2r = b2.reshape(1, C).astype(jnp.float32)

    cost = pl.CostEstimate(
        # two selection matmuls (~4*N*CL*C) + two FCs + final multiply/epilogue
        flops=int(4 * N * CL * C + 4 * N * C * Sc + 2 * N * CL),
        transcendentals=0,
        bytes_accessed=int(2 * N * CL * itemsize
                           + 2 * C * CL * itemsize
                           + 4 * (w1.size + w2.size + b1.size + b2.size)),
    )

    out2 = pl.pallas_call(
        _se_kernel,
        out_shape=jax.ShapeDtypeStruct((N, CL), dtype),
        grid_spec=pltpu.PrefetchScalarGridSpec(
            num_scalar_prefetch=0,
            grid=(N // nb,),
            in_specs=[
                pl.BlockSpec((nb, CL), lambda i: (i, 0)),   # x slab (pipelined)
                pl.BlockSpec((CL, C), lambda i: (0, 0)),    # B  (constant block)
                pl.BlockSpec((C, CL), lambda i: (0, 0)),    # Bt (constant block)
                pl.BlockSpec((C, Sc), lambda i: (0, 0)),    # w1^T
                pl.BlockSpec((1, Sc), lambda i: (0, 0)),    # b1
                pl.BlockSpec((Sc, C), lambda i: (0, 0)),    # w2^T
                pl.BlockSpec((1, C), lambda i: (0, 0)),     # b2
            ],
            out_specs=pl.BlockSpec((nb, CL), lambda i: (i, 0)),
        ),
        compiler_params=pltpu.CompilerParams(
            dimension_semantics=("parallel",)),
        cost_estimate=cost,
    )(x2, B, Bt, w1t, b1r, w2t, b2r)

    return out2.reshape(N, C, L)


def se_reference(x, w1, b1, w2, b2):
    """Pure-JAX reference matching the PyTorch forward."""
    pooled = jnp.mean(x, axis=-1, keepdims=True)                     # (N, C, 1)
    s1 = jnp.einsum("sc,ncl->nsl", w1, pooled) + b1[None, :, None]
    s1 = jnp.maximum(s1, 0.0)
    s2 = jnp.einsum("cs,nsl->ncl", w2, s1) + b2[None, :, None]
    scale = jnp.clip(s2 + 3.0, 0.0, 6.0) / 6.0
    return scale * x


if __name__ == "__main__":
    # Module config: input_c=16, squeeze_factor=4 -> squeeze_c = 8
    input_c = 16
    squeeze_factor = 4
    squeeze_c = _make_divisible(input_c // squeeze_factor, 8)

    N, C, L = 2, input_c, 64

    key = jax.random.PRNGKey(0)
    kx, k1, k2, k3, k4 = jax.random.split(key, 5)
    x = jax.random.normal(kx, (N, C, L), dtype=jnp.float32)
    # fc1: Conv1d(input_c, squeeze_c, 1) -> weight (Sc, C), bias (Sc,)
    w1 = jax.random.normal(k1, (squeeze_c, C), dtype=jnp.float32) * 0.1
    b1 = jax.random.normal(k2, (squeeze_c,), dtype=jnp.float32) * 0.1
    # fc2: Conv1d(squeeze_c, input_c, 1) -> weight (C, Sc), bias (C,)
    w2 = jax.random.normal(k3, (C, squeeze_c), dtype=jnp.float32) * 0.1
    b2 = jax.random.normal(k4, (C,), dtype=jnp.float32) * 0.1

    # f32 run (matches the PyTorch module's dtype).
    out = jax.block_until_ready(squeeze_excitation(x, w1, b1, w2, b2))
    ref = se_reference(x, w1, b1, w2, b2)
    assert out.shape == (N, C, L)
    assert jnp.allclose(out, ref, atol=1e-4, rtol=1e-4), "f32 mismatch vs reference"

    # bf16 I/O run (halves HBM traffic; pool/FC accumulation stays f32).
    x_bf = x.astype(jnp.bfloat16)
    out_bf = jax.block_until_ready(squeeze_excitation(x_bf, w1, b1, w2, b2))
    ref_bf = se_reference(x_bf.astype(jnp.float32), w1, b1, w2, b2)
    assert out_bf.dtype == jnp.bfloat16
    assert jnp.allclose(out_bf.astype(jnp.float32), ref_bf, atol=3e-2, rtol=3e-2), \
        "bf16 mismatch vs reference"

    print("KERNEL_OK")
</pallas_src>

<mosaic_0001>
module attributes {stable_mosaic.version = 11 : i64} {
  func.func @_se_kernel(%arg0: i32, %arg1: memref<2x1024xf32, #tpu.memory_space<vmem>>, %arg2: memref<1024x16xf32, #tpu.memory_space<vmem>>, %arg3: memref<16x1024xf32, #tpu.memory_space<vmem>>, %arg4: memref<16x8xf32, #tpu.memory_space<vmem>>, %arg5: memref<1x8xf32, #tpu.memory_space<vmem>>, %arg6: memref<8x16xf32, #tpu.memory_space<vmem>>, %arg7: memref<1x16xf32, #tpu.memory_space<vmem>>, %arg8: memref<2x1024xf32, #tpu.memory_space<vmem>>) attributes {dimension_semantics = [#tpu.dimension_semantics<parallel>], iteration_bounds = array<i64: 1>, scalar_prefetch = 0 : i64, scratch_operands = 0 : i64, tpu.core_type = #tpu.core_type<tc>, window_params = [{transform_indices = @transform_0, window_bounds = array<i64: 2, 1024>}, {pipeline_mode = #tpu.pipeline_mode<synchronous>, transform_indices = @transform_1, window_bounds = array<i64: 1024, 16>}, {pipeline_mode = #tpu.pipeline_mode<synchronous>, transform_indices = @transform_2, window_bounds = array<i64: 16, 1024>}, {pipeline_mode = #tpu.pipeline_mode<synchronous>, transform_indices = @transform_3, window_bounds = array<i64: 16, 8>}, {pipeline_mode = #tpu.pipeline_mode<synchronous>, transform_indices = @transform_4, window_bounds = array<i64: 1, 8>}, {pipeline_mode = #tpu.pipeline_mode<synchronous>, transform_indices = @transform_5, window_bounds = array<i64: 8, 16>}, {pipeline_mode = #tpu.pipeline_mode<synchronous>, transform_indices = @transform_6, window_bounds = array<i64: 1, 16>}, {transform_indices = @transform_7, window_bounds = array<i64: 2, 1024>}]} {
    %c0 = arith.constant 0 : index
    %c0_0 = arith.constant 0 : index
    %0 = vector.load %arg1[%c0, %c0_0] : memref<2x1024xf32, #tpu.memory_space<vmem>>, vector<2x1024xf32>
    %c0_1 = arith.constant 0 : index
    %c0_2 = arith.constant 0 : index
    %1 = vector.load %arg2[%c0_1, %c0_2] : memref<1024x16xf32, #tpu.memory_space<vmem>>, vector<1024x16xf32>
    %cst = arith.constant dense<0.000000e+00> : vector<2x16xf32>
    %2 = tpu.matmul %0, %1, %cst {dimension_numbers = #tpu.dot_dimension_numbers<[1], [0], [0], [1], [0, 0, 1, 1], [], []>} : vector<2x1024xf32>, vector<1024x16xf32>, vector<2x16xf32> -> vector<2x16xf32>
    %c0_3 = arith.constant 0 : index
    %c0_4 = arith.constant 0 : index
    %3 = vector.load %arg4[%c0_3, %c0_4] : memref<16x8xf32, #tpu.memory_space<vmem>>, vector<16x8xf32>
    %cst_5 = arith.constant dense<0.000000e+00> : vector<2x8xf32>
    %4 = tpu.matmul %2, %3, %cst_5 {dimension_numbers = #tpu.dot_dimension_numbers<[1], [0], [0], [1], [0, 0, 1, 1], [], []>} : vector<2x16xf32>, vector<16x8xf32>, vector<2x8xf32> -> vector<2x8xf32>
    %c0_6 = arith.constant 0 : index
    %c0_7 = arith.constant 0 : index
    %5 = vector.load %arg5[%c0_6, %c0_7] : memref<1x8xf32, #tpu.memory_space<vmem>>, vector<1x8xf32>
    %6 = vector.broadcast %5 : vector<1x8xf32> to vector<2x8xf32>
    %7 = arith.addf %4, %6 : vector<2x8xf32>
    %cst_8 = arith.constant 0.000000e+00 : f32
    %8 = vector.broadcast %cst_8 : f32 to vector<2x8xf32>
    %9 = arith.maximumf %7, %8 : vector<2x8xf32>
    %c0_9 = arith.constant 0 : index
    %c0_10 = arith.constant 0 : index
    %10 = vector.load %arg6[%c0_9, %c0_10] : memref<8x16xf32, #tpu.memory_space<vmem>>, vector<8x16xf32>
    %cst_11 = arith.constant dense<0.000000e+00> : vector<2x16xf32>
    %11 = tpu.matmul %9, %10, %cst_11 {dimension_numbers = #tpu.dot_dimension_numbers<[1], [0], [0], [1], [0, 0, 1, 1], [], []>} : vector<2x8xf32>, vector<8x16xf32>, vector<2x16xf32> -> vector<2x16xf32>
    %c0_12 = arith.constant 0 : index
    %c0_13 = arith.constant 0 : index
    %12 = vector.load %arg7[%c0_12, %c0_13] : memref<1x16xf32, #tpu.memory_space<vmem>>, vector<1x16xf32>
    %13 = vector.broadcast %12 : vector<1x16xf32> to vector<2x16xf32>
    %14 = arith.addf %11, %13 : vector<2x16xf32>
    %cst_14 = arith.constant 0.166666672 : f32
    %15 = vector.broadcast %cst_14 : f32 to vector<2x16xf32>
    %16 = arith.mulf %14, %15 : vector<2x16xf32>
    %cst_15 = arith.constant 5.000000e-01 : f32
    %17 = vector.broadcast %cst_15 : f32 to vector<2x16xf32>
    %18 = arith.addf %16, %17 : vector<2x16xf32>
    %cst_16 = arith.constant 0.000000e+00 : f32
    %cst_17 = arith.constant 1.000000e+00 : f32
    %19 = vector.broadcast %cst_16 : f32 to vector<2x16xf32>
    %20 = arith.maximumf %19, %18 : vector<2x16xf32>
    %21 = vector.broadcast %cst_17 : f32 to vector<2x16xf32>
    %22 = arith.minimumf %21, %20 : vector<2x16xf32>
    %c0_18 = arith.constant 0 : index
    %c0_19 = arith.constant 0 : index
    %23 = vector.load %arg3[%c0_18, %c0_19] : memref<16x1024xf32, #tpu.memory_space<vmem>>, vector<16x1024xf32>
    %cst_20 = arith.constant dense<0.000000e+00> : vector<2x1024xf32>
    %24 = tpu.matmul %22, %23, %cst_20 {dimension_numbers = #tpu.dot_dimension_numbers<[1], [0], [0], [1], [0, 0, 1, 1], [], []>} : vector<2x16xf32>, vector<16x1024xf32>, vector<2x1024xf32> -> vector<2x1024xf32>
    %25 = arith.mulf %24, %0 : vector<2x1024xf32>
    %c0_21 = arith.constant 0 : index
    %c0_22 = arith.constant 0 : index
    %26 = vector.load %arg8[%c0_21, %c0_22] : memref<2x1024xf32, #tpu.memory_space<vmem>>, vector<2x1024xf32>
    tpu.vector_store %arg8[%c0_21, %c0_22], %25 {strides = array<i32>} : memref<2x1024xf32, #tpu.memory_space<vmem>>, vector<2x1024xf32>,
    return
  }
  func.func @transform_0(%arg0: i32) -> (i32, i32) {
    %c0_i32 = arith.constant 0 : i32
    %c0_i32_0 = arith.constant 0 : i32
    return %arg0, %c0_i32 : i32, i32
  }
  func.func @transform_1(%arg0: i32) -> (i32, i32) {
    %c0_i32 = arith.constant 0 : i32
    %c0_i32_0 = arith.constant 0 : i32
    %c0_i32_1 = arith.constant 0 : i32
    return %c0_i32, %c0_i32_0 : i32, i32
  }
  func.func @transform_2(%arg0: i32) -> (i32, i32) {
    %c0_i32 = arith.constant 0 : i32
    %c0_i32_0 = arith.constant 0 : i32
    %c0_i32_1 = arith.constant 0 : i32
    return %c0_i32, %c0_i32_0 : i32, i32
  }
  func.func @transform_3(%arg0: i32) -> (i32, i32) {
    %c0_i32 = arith.constant 0 : i32
    %c0_i32_0 = arith.constant 0 : i32
    %c0_i32_1 = arith.constant 0 : i32
    return %c0_i32, %c0_i32_0 : i32, i32
  }
  func.func @transform_4(%arg0: i32) -> (i32, i32) {
    %c0_i32 = arith.constant 0 : i32
    %c0_i32_0 = arith.constant 0 : i32
    %c0_i32_1 = arith.constant 0 : i32
    return %c0_i32, %c0_i32_0 : i32, i32
  }
  func.func @transform_5(%arg0: i32) -> (i32, i32) {
    %c0_i32 = arith.constant 0 : i32
    %c0_i32_0 = arith.constant 0 : i32
    %c0_i32_1 = arith.constant 0 : i32
    return %c0_i32, %c0_i32_0 : i32, i32
  }
  func.func @transform_6(%arg0: i32) -> (i32, i32) {
    %c0_i32 = arith.constant 0 : i32
    %c0_i32_0 = arith.constant 0 : i32
    %c0_i32_1 = arith.constant 0 : i32
    return %c0_i32, %c0_i32_0 : i32, i32
  }
  func.func @transform_7(%arg0: i32) -> (i32, i32) {
    %c0_i32 = arith.constant 0 : i32
    %c0_i32_0 = arith.constant 0 : i32
    return %arg0, %c0_i32 : i32, i32
  }
}

</mosaic_0001>

<llo_original>
// kernel: tpu_custom_call.1
$region0: #{tpu_custom_call.1}
  #allocation0 [shape = 'u32[]', space=smem, size = 0x4, offset = 0x4, fixed_abs, tag = 'smem constant byte address 0x4 - core index']
  #allocation1 [shape = 'u32[144,128]{1,0:T(1,128)}', space=vmem, size = 0x12000, scoped, tag = 'internal scratch']
  %s0 = inlined_call_operand.vmem [shape: f32[2,1024], index: 0, kind: input, shape index: {}]
  %s1 = inlined_call_operand.vmem [shape: f32[1024,16], index: 1, kind: input, shape index: {}]
  %s2 = inlined_call_operand.vmem [shape: f32[16,1024], index: 2, kind: input, shape index: {}]
  %s3 = inlined_call_operand.vmem [shape: f32[16,8], index: 3, kind: input, shape index: {}]
  %s4 = inlined_call_operand.vmem [shape: f32[1,8], index: 4, kind: input, shape index: {}]
  %s5 = inlined_call_operand.vmem [shape: f32[8,16], index: 5, kind: input, shape index: {}]
  %s6 = inlined_call_operand.vmem [shape: f32[1,16], index: 6, kind: input, shape index: {}]
  %s7 = inlined_call_operand.hbm [shape: f32[2,1024], index: 7, kind: output, shape index: {}]
  %s8 = sld [smem:[#allocation0]]
  $region38: #{tpu_custom_call.1} parent=0
    _
  %s10 = ssub.s32 1, %s8
  %s11 = scalar_select 0, %s10, %s8
  $region1: #{tpu_custom_call.1} parent=0
    #allocation2 [shape = 'u8[8192]{0}', space=vmem, size = 0x2000, scoped, tag = 'output window, operand 0, single buffered']
    #allocation3 [shape = 's32[1]{0}', space=sflag, size = 0x4, scoped, tag = 'scoped memory for tpu_custom_call.1']
    %12 = vsyncpa [#allocation3], 0
    // Predicated region
    $region2: #{tpu_custom_call.1} parent=1 // pred_check
      _
    $region3: #{tpu_custom_call.1} parent=1 // pred_check_branch
      %14 = sbr.rel (0) target = $region5
    $region4: #{tpu_custom_call.1} parent=1 // pred_region
      _
    $region5: #{tpu_custom_call.1} parent=1 // pred_fallthru
      _
    // Predicated region
    $region6: #{tpu_custom_call.1} parent=1 // pred_check
      _
    $region7: #{tpu_custom_call.1} parent=1 // pred_check_branch
      %16 = sbr.rel (0) target = $region9
    $region8: #{tpu_custom_call.1} parent=1 // pred_region
      _
    $region9: #{tpu_custom_call.1} parent=1 // pred_fallthru
      _
    // Predicated region
    $region10: #{tpu_custom_call.1} parent=1 // pred_check
      _
    $region11: #{tpu_custom_call.1} parent=1 // pred_check_branch
      %18 = sbr.rel (0) target = $region13
    $region12: #{tpu_custom_call.1} parent=1 // pred_region
      _
    $region13: #{tpu_custom_call.1} parent=1 // pred_fallthru
      _
    // Predicated region
    $region14: #{tpu_custom_call.1} parent=1 // pred_check
      _
    $region15: #{tpu_custom_call.1} parent=1 // pred_check_branch
      %20 = sbr.rel (0) target = $region17
    $region16: #{tpu_custom_call.1} parent=1 // pred_region
      _
    $region17: #{tpu_custom_call.1} parent=1 // pred_fallthru
      _
    // Predicated region
    $region18: #{tpu_custom_call.1} parent=1 // pred_check
      _
    $region19: #{tpu_custom_call.1} parent=1 // pred_check_branch
      %22 = sbr.rel (0) target = $region21
    $region20: #{tpu_custom_call.1} parent=1 // pred_region
      _
    $region21: #{tpu_custom_call.1} parent=1 // pred_fallthru
      _
    // Predicated region
    $region22: #{tpu_custom_call.1} parent=1 // pred_check
      _
    $region23: #{tpu_custom_call.1} parent=1 // pred_check_branch
      %24 = sbr.rel (0) target = $region25
    $region24: #{tpu_custom_call.1} parent=1 // pred_region
      _
    $region25: #{tpu_custom_call.1} parent=1 // pred_fallthru
      _
    // Predicated region
    $region26: #{tpu_custom_call.1} parent=1 // pred_check
      _
    $region27: #{tpu_custom_call.1} parent=1 // pred_check_branch
      %26 = sbr.rel (0) target = $region29
    $region28: #{tpu_custom_call.1} parent=1 // pred_region
      _
    $region29: #{tpu_custom_call.1} parent=1 // pred_fallthru
      _
    %v27 = vld [vmem:[%s0] sm:$0xff]
    %v28 = vld [vmem:[%s0 + $0x8] sm:$0xff]
    %v29 = vld [vmem:[%s1] sm:$0xff]
    %v30 = vld [vmem:[%s1 + $0x8] sm:$0xff]
    %v31 = vld [vmem:[%s1 + $0x10] sm:$0xff]
    %v32 = vld [vmem:[%s1 + $0x18] sm:$0xff]
    %v33 = vld [vmem:[%s1 + $0x20] sm:$0xff]
    %v34 = vld [vmem:[%s1 + $0x28] sm:$0xff]
    %v35 = vld [vmem:[%s1 + $0x30] sm:$0xff]
    %v36 = vld [vmem:[%s1 + $0x38] sm:$0xff]
    %v37 = vld [vmem:[%s1 + $0x40] sm:$0xff]
    %v38 = vld [vmem:[%s1 + $0x48] sm:$0xff]
    %v39 = vld [vmem:[%s1 + $0x50] sm:$0xff]
    %v40 = vld [vmem:[%s1 + $0x58] sm:$0xff]
    %v41 = vld [vmem:[%s1 + $0x60] sm:$0xff]
    %v42 = vld [vmem:[%s1 + $0x68] sm:$0xff]
    %v43 = vld [vmem:[%s1 + $0x70] sm:$0xff]
    %v44 = vld [vmem:[%s1 + $0x78] sm:$0xff]
    %v45 = vld [vmem:[%s1 + $0x80] sm:$0xff]
    %v46 = vld [vmem:[%s1 + $0x88] sm:$0xff]
    %v47 = vld [vmem:[%s1 + $0x90] sm:$0xff]
    %v48 = vld [vmem:[%s1 + $0x98] sm:$0xff]
    %v49 = vld [vmem:[%s1 + $0xa0] sm:$0xff]
    %v50 = vld [vmem:[%s1 + $0xa8] sm:$0xff]
    %v51 = vld [vmem:[%s1 + $0xb0] sm:$0xff]
    %v52 = vld [vmem:[%s1 + $0xb8] sm:$0xff]
    %v53 = vld [vmem:[%s1 + $0xc0] sm:$0xff]
    %v54 = vld [vmem:[%s1 + $0xc8] sm:$0xff]
    %v55 = vld [vmem:[%s1 + $0xd0] sm:$0xff]
    %v56 = vld [vmem:[%s1 + $0xd8] sm:$0xff]
    %v57 = vld [vmem:[%s1 + $0xe0] sm:$0xff]
    %v58 = vld [vmem:[%s1 + $0xe8] sm:$0xff]
    %v59 = vld [vmem:[%s1 + $0xf0] sm:$0xff]
    %v60 = vld [vmem:[%s1 + $0xf8] sm:$0xff]
    %v61 = vld [vmem:[%s1 + $0x100] sm:$0xff]
    %v62 = vld [vmem:[%s1 + $0x108] sm:$0xff]
    %v63 = vld [vmem:[%s1 + $0x110] sm:$0xff]
    %v64 = vld [vmem:[%s1 + $0x118] sm:$0xff]
    %v65 = vld [vmem:[%s1 + $0x120] sm:$0xff]
    %v66 = vld [vmem:[%s1 + $0x128] sm:$0xff]
    %v67 = vld [vmem:[%s1 + $0x130] sm:$0xff]
    %v68 = vld [vmem:[%s1 + $0x138] sm:$0xff]
    %v69 = vld [vmem:[%s1 + $0x140] sm:$0xff]
    %v70 = vld [vmem:[%s1 + $0x148] sm:$0xff]
    %v71 = vld [vmem:[%s1 + $0x150] sm:$0xff]
    %v72 = vld [vmem:[%s1 + $0x158] sm:$0xff]
    %v73 = vld [vmem:[%s1 + $0x160] sm:$0xff]
    %v74 = vld [vmem:[%s1 + $0x168] sm:$0xff]
    %v75 = vld [vmem:[%s1 + $0x170] sm:$0xff]
    %v76 = vld [vmem:[%s1 + $0x178] sm:$0xff]
    %v77 = vld [vmem:[%s1 + $0x180] sm:$0xff]
    %v78 = vld [vmem:[%s1 + $0x188] sm:$0xff]
    %v79 = vld [vmem:[%s1 + $0x190] sm:$0xff]
    %v80 = vld [vmem:[%s1 + $0x198] sm:$0xff]
    %v81 = vld [vmem:[%s1 + $0x1a0] sm:$0xff]
    %v82 = vld [vmem:[%s1 + $0x1a8] sm:$0xff]
    %v83 = vld [vmem:[%s1 + $0x1b0] sm:$0xff]
    %v84 = vld [vmem:[%s1 + $0x1b8] sm:$0xff]
    %v85 = vld [vmem:[%s1 + $0x1c0] sm:$0xff]
    %v86 = vld [vmem:[%s1 + $0x1c8] sm:$0xff]
    %v87 = vld [vmem:[%s1 + $0x1d0] sm:$0xff]
    %v88 = vld [vmem:[%s1 + $0x1d8] sm:$0xff]
    %v89 = vld [vmem:[%s1 + $0x1e0] sm:$0xff]
    %v90 = vld [vmem:[%s1 + $0x1e8] sm:$0xff]
    %v91 = vld [vmem:[%s1 + $0x1f0] sm:$0xff]
    %v92 = vld [vmem:[%s1 + $0x1f8] sm:$0xff]
    %v93 = vld [vmem:[%s1 + $0x200] sm:$0xff]
    %v94 = vld [vmem:[%s1 + $0x208] sm:$0xff]
    %v95 = vld [vmem:[%s1 + $0x210] sm:$0xff]
    %v96 = vld [vmem:[%s1 + $0x218] sm:$0xff]
    %v97 = vld [vmem:[%s1 + $0x220] sm:$0xff]
    %v98 = vld [vmem:[%s1 + $0x228] sm:$0xff]
    %v99 = vld [vmem:[%s1 + $0x230] sm:$0xff]
    %v100 = vld [vmem:[%s1 + $0x238] sm:$0xff]
    %v101 = vld [vmem:[%s1 + $0x240] sm:$0xff]
    %v102 = vld [vmem:[%s1 + $0x248] sm:$0xff]
    %v103 = vld [vmem:[%s1 + $0x250] sm:$0xff]
    %v104 = vld [vmem:[%s1 + $0x258] sm:$0xff]
    %v105 = vld [vmem:[%s1 + $0x260] sm:$0xff]
    %v106 = vld [vmem:[%s1 + $0x268] sm:$0xff]
    %v107 = vld [vmem:[%s1 + $0x270] sm:$0xff]
    %v108 = vld [vmem:[%s1 + $0x278] sm:$0xff]
    %v109 = vld [vmem:[%s1 + $0x280] sm:$0xff]
    %v110 = vld [vmem:[%s1 + $0x288] sm:$0xff]
    %v111 = vld [vmem:[%s1 + $0x290] sm:$0xff]
    %v112 = vld [vmem:[%s1 + $0x298] sm:$0xff]
    %v113 = vld [vmem:[%s1 + $0x2a0] sm:$0xff]
    %v114 = vld [vmem:[%s1 + $0x2a8] sm:$0xff]
    %v115 = vld [vmem:[%s1 + $0x2b0] sm:$0xff]
    %v116 = vld [vmem:[%s1 + $0x2b8] sm:$0xff]
    %v117 = vld [vmem:[%s1 + $0x2c0] sm:$0xff]
    %v118 = vld [vmem:[%s1 + $0x2c8] sm:$0xff]
    %v119 = vld [vmem:[%s1 + $0x2d0] sm:$0xff]
    %v120 = vld [vmem:[%s1 + $0x2d8] sm:$0xff]
    %v121 = vld [vmem:[%s1 + $0x2e0] sm:$0xff]
    %v122 = vld [vmem:[%s1 + $0x2e8] sm:$0xff]
    %v123 = vld [vmem:[%s1 + $0x2f0] sm:$0xff]
    %v124 = vld [vmem:[%s1 + $0x2f8] sm:$0xff]
    %v125 = vld [vmem:[%s1 + $0x300] sm:$0xff]
    %v126 = vld [vmem:[%s1 + $0x308] sm:$0xff]
    %v127 = vld [vmem:[%s1 + $0x310] sm:$0xff]
    %v128 = vld [vmem:[%s1 + $0x318] sm:$0xff]
    %v129 = vld [vmem:[%s1 + $0x320] sm:$0xff]
    %v130 = vld [vmem:[%s1 + $0x328] sm:$0xff]
    %v131 = vld [vmem:[%s1 + $0x330] sm:$0xff]
    %v132 = vld [vmem:[%s1 + $0x338] sm:$0xff]
    %v133 = vld [vmem:[%s1 + $0x340] sm:$0xff]
    %v134 = vld [vmem:[%s1 + $0x348] sm:$0xff]
    %v135 = vld [vmem:[%s1 + $0x350] sm:$0xff]
    %v136 = vld [vmem:[%s1 + $0x358] sm:$0xff]
    %v137 = vld [vmem:[%s1 + $0x360] sm:$0xff]
    %v138 = vld [vmem:[%s1 + $0x368] sm:$0xff]
    %v139 = vld [vmem:[%s1 + $0x370] sm:$0xff]
    %v140 = vld [vmem:[%s1 + $0x378] sm:$0xff]
    %v141 = vld [vmem:[%s1 + $0x380] sm:$0xff]
    %v142 = vld [vmem:[%s1 + $0x388] sm:$0xff]
    %v143 = vld [vmem:[%s1 + $0x390] sm:$0xff]
    %v144 = vld [vmem:[%s1 + $0x398] sm:$0xff]
    %v145 = vld [vmem:[%s1 + $0x3a0] sm:$0xff]
    %v146 = vld [vmem:[%s1 + $0x3a8] sm:$0xff]
    %v147 = vld [vmem:[%s1 + $0x3b0] sm:$0xff]
    %v148 = vld [vmem:[%s1 + $0x3b8] sm:$0xff]
    %v149 = vld [vmem:[%s1 + $0x3c0] sm:$0xff]
    %v150 = vld [vmem:[%s1 + $0x3c8] sm:$0xff]
    %v151 = vld [vmem:[%s1 + $0x3d0] sm:$0xff]
    %v152 = vld [vmem:[%s1 + $0x3d8] sm:$0xff]
    %v153 = vld [vmem:[%s1 + $0x3e0] sm:$0xff]
    %v154 = vld [vmem:[%s1 + $0x3e8] sm:$0xff]
    %v155 = vld [vmem:[%s1 + $0x3f0] sm:$0xff]
    %v156 = vld [vmem:[%s1 + $0x3f8] sm:$0xff]
    %v159 = vcombine.high %v27, %v27
    %v161 = vunpack.c.l.s4 1983009808
    %v162 = vunpack.c.0.s8 %v161
    %v163 = vlaneseq
    %v164 = vshrl.u32 %v163, 7
    %v165 = vsub.s32 %v162, %v164
    %v166 = vrot.slane %v27, %v165
    %v168 = vunpack.c.l.s4 1983009808
    %v169 = vunpack.c.0.s8 %v168
    %v170 = vlaneseq
    %v171 = vshrl.u32 %v170, 7
    %v172 = vsub.s32 %v169, %v171
    %v173 = vrot.slane %v159, %v172
    %v174 = vcombine.high %v166, %v166
    %v175 = vcombine.high %v173, %v173
    %v176 = vcombine.high %v28, %v28
    %v178 = vunpack.c.l.s4 1983009808
    %v179 = vunpack.c.0.s8 %v178
    %v180 = vlaneseq
    %v181 = vshrl.u32 %v180, 7
    %v182 = vsub.s32 %v179, %v181
    %v183 = vrot.slane %v28, %v182
    %v185 = vunpack.c.l.s4 1983009808
    %v186 = vunpack.c.0.s8 %v185
    %v187 = vlaneseq
    %v188 = vshrl.u32 %v187, 7
    %v189 = vsub.s32 %v186, %v188
    %v190 = vrot.slane %v176, %v189
    %v191 = vcombine.high %v183, %v183
    %v192 = vcombine.high %v190, %v190
    %201 = vmatprep.subr.mxu0 0.0
    %202 = vmatpush1.msra.mxu0 %v29
    %203 = vmatprep.subr.mxu0 0.0
    %204 = vmatpush1.msra.mxu0 %v30
    %205 = vmatprep.subr.mxu0 0.0
    %206 = vmatpush1.msra.mxu0 %v31
    %207 = vmatprep.subr.mxu0 0.0
    %208 = vmatpush1.msra.mxu0 %v32
    %209 = vmatprep.subr.mxu0 0.0
    %210 = vmatpush1.msra.mxu0 %v33
    %211 = vmatprep.subr.mxu0 0.0
    %212 = vmatpush1.msra.mxu0 %v34
    %213 = vmatprep.subr.mxu0 0.0
    %214 = vmatpush1.msra.mxu0 %v35
    %215 = vmatprep.subr.mxu0 0.0
    %216 = vmatpush1.msra.mxu0 %v36
    %217 = vmatprep.subr.mxu0 0.0
    %218 = vmatpush1.msra.mxu0 %v37
    %219 = vmatprep.subr.mxu0 0.0
    %220 = vmatpush1.msra.mxu0 %v38
    %221 = vmatprep.subr.mxu0 0.0
    %222 = vmatpush1.msra.mxu0 %v39
    %223 = vmatprep.subr.mxu0 0.0
    %224 = vmatpush1.msra.mxu0 %v40
    %225 = vmatprep.subr.mxu0 0.0
    %226 = vmatpush1.msra.mxu0 %v41
    %227 = vmatprep.subr.mxu0 0.0
    %228 = vmatpush1.msra.mxu0 %v42
    %229 = vmatprep.subr.mxu0 0.0
    %230 = vmatpush1.msra.mxu0 %v43
    %231 = vmatprep.subr.mxu0 0.0
    %232 = vmatpush1.msra.mxu0 %v44
    %233 = vmatprep.subr.mxu0 0.0
    %234 = vmatpush1.msra.mxu0 %v45
    %235 = vmatprep.subr.mxu0 0.0
    %236 = vmatpush1.msra.mxu0 %v46
    %237 = vmatprep.subr.mxu0 0.0
    %238 = vmatpush1.msra.mxu0 %v47
    %239 = vmatprep.subr.mxu0 0.0
    %240 = vmatpush1.msra.mxu0 %v48
    %241 = vmatprep.subr.mxu0 0.0
    %242 = vmatpush1.msra.mxu0 %v49
    %243 = vmatprep.subr.mxu0 0.0
    %244 = vmatpush1.msra.mxu0 %v50
    %245 = vmatprep.subr.mxu0 0.0
    %246 = vmatpush1.msra.mxu0 %v51
    %247 = vmatprep.subr.mxu0 0.0
    %248 = vmatpush1.msra.mxu0 %v52
    %249 = vmatprep.subr.mxu0 0.0
    %250 = vmatpush1.msra.mxu0 %v53
    %251 = vmatprep.subr.mxu0 0.0
    %252 = vmatpush1.msra.mxu0 %v54
    %253 = vmatprep.subr.mxu0 0.0
    %254 = vmatpush1.msra.mxu0 %v55
    %255 = vmatprep.subr.mxu0 0.0
    %256 = vmatpush1.msra.mxu0 %v56
    %257 = vmatprep.subr.mxu0 0.0
    %258 = vmatpush1.msra.mxu0 %v57
    %259 = vmatprep.subr.mxu0 0.0
    %260 = vmatpush1.msra.mxu0 %v58
    %261 = vmatprep.subr.mxu0 0.0
    %262 = vmatpush1.msra.mxu0 %v59
    %263 = vmatprep.subr.mxu0 0.0
    %264 = vmatpush1.msra.mxu0 %v60
    %265 = vmatprep.mubr.f32.mxu0 %v174
    %266 = vmatmul.mubr.f32.gmra.mrb[0].mxu0 %v166
    %v267 = vpop.f32.mrb[0].mxu0
    %v268 = vadd.f32 0.0, %v267
    %v269 = vpop.f32.mrb[0].mxu0
    %270 = vdwg.mxu0
    %271 = vmatprep.subr.mxu0 0.0
    %272 = vmatpush1.msra.mxu0 %v61
    %273 = vmatprep.subr.mxu0 0.0
    %274 = vmatpush1.msra.mxu0 %v62
    %275 = vmatprep.subr.mxu0 0.0
    %276 = vmatpush1.msra.mxu0 %v63
    %277 = vmatprep.subr.mxu0 0.0
    %278 = vmatpush1.msra.mxu0 %v64
    %279 = vmatprep.subr.mxu0 0.0
    %280 = vmatpush1.msra.mxu0 %v65
    %281 = vmatprep.subr.mxu0 0.0
    %282 = vmatpush1.msra.mxu0 %v66
    %283 = vmatprep.subr.mxu0 0.0
    %284 = vmatpush1.msra.mxu0 %v67
    %285 = vmatprep.subr.mxu0 0.0
    %286 = vmatpush1.msra.mxu0 %v68
    %287 = vmatprep.subr.mxu0 0.0
    %288 = vmatpush1.msra.mxu0 %v69
    %289 = vmatprep.subr.mxu0 0.0
    %290 = vmatpush1.msra.mxu0 %v70
    %291 = vmatprep.subr.mxu0 0.0
    %292 = vmatpush1.msra.mxu0 %v71
    %293 = vmatprep.subr.mxu0 0.0
    %294 = vmatpush1.msra.mxu0 %v72
    %295 = vmatprep.subr.mxu0 0.0
    %296 = vmatpush1.msra.mxu0 %v73
    %297 = vmatprep.subr.mxu0 0.0
    %298 = vmatpush1.msra.mxu0 %v74
    %299 = vmatprep.subr.mxu0 0.0
    %300 = vmatpush1.msra.mxu0 %v75
    %301 = vmatprep.subr.mxu0 0.0
    %302 = vmatpush1.msra.mxu0 %v76
    %303 = vmatprep.subr.mxu0 0.0
    %304 = vmatpush1.msra.mxu0 %v77
    %305 = vmatprep.subr.mxu0 0.0
    %306 = vmatpush1.msra.mxu0 %v78
    %307 = vmatprep.subr.mxu0 0.0
    %308 = vmatpush1.msra.mxu0 %v79
    %309 = vmatprep.subr.mxu0 0.0
    %310 = vmatpush1.msra.mxu0 %v80
    %311 = vmatprep.subr.mxu0 0.0
    %312 = vmatpush1.msra.mxu0 %v81
    %313 = vmatprep.subr.mxu0 0.0
    %314 = vmatpush1.msra.mxu0 %v82
    %315 = vmatprep.subr.mxu0 0.0
    %316 = vmatpush1.msra.mxu0 %v83
    %317 = vmatprep.subr.mxu0 0.0
    %318 = vmatpush1.msra.mxu0 %v84
    %319 = vmatprep.subr.mxu0 0.0
    %320 = vmatpush1.msra.mxu0 %v85
    %321 = vmatprep.subr.mxu0 0.0
    %322 = vmatpush1.msra.mxu0 %v86
    %323 = vmatprep.subr.mxu0 0.0
    %324 = vmatpush1.msra.mxu0 %v87
    %325 = vmatprep.subr.mxu0 0.0
    %326 = vmatpush1.msra.mxu0 %v88
    %327 = vmatprep.subr.mxu0 0.0
    %328 = vmatpush1.msra.mxu0 %v89
    %329 = vmatprep.subr.mxu0 0.0
    %330 = vmatpush1.msra.mxu0 %v90
    %331 = vmatprep.subr.mxu0 0.0
    %332 = vmatpush1.msra.mxu0 %v91
    %333 = vmatprep.subr.mxu0 0.0
    %334 = vmatpush1.msra.mxu0 %v92
    %335 = vmatprep.mubr.f32.mxu0 %v175
    %336 = vmatmul.mubr.f32.gmra.mrb[0].mxu0 %v173
    %v337 = vpop.f32.mrb[0].mxu0
    %v338 = vadd.f32 %v268, %v337
    %v339 = vpop.f32.mrb[0].mxu0
    %340 = vdwg.mxu0
    %341 = vmatprep.subr.mxu0 0.0
    %342 = vmatpush1.msra.mxu0 %v93
    %343 = vmatprep.subr.mxu0 0.0
    %344 = vmatpush1.msra.mxu0 %v94
    %345 = vmatprep.subr.mxu0 0.0
    %346 = vmatpush1.msra.mxu0 %v95
    %347 = vmatprep.subr.mxu0 0.0
    %348 = vmatpush1.msra.mxu0 %v96
    %349 = vmatprep.subr.mxu0 0.0
    %350 = vmatpush1.msra.mxu0 %v97
    %351 = vmatprep.subr.mxu0 0.0
    %352 = vmatpush1.msra.mxu0 %v98
    %353 = vmatprep.subr.mxu0 0.0
    %354 = vmatpush1.msra.mxu0 %v99
    %355 = vmatprep.subr.mxu0 0.0
    %356 = vmatpush1.msra.mxu0 %v100
    %357 = vmatprep.subr.mxu0 0.0
    %358 = vmatpush1.msra.mxu0 %v101
    %359 = vmatprep.subr.mxu0 0.0
    %360 = vmatpush1.msra.mxu0 %v102
    %361 = vmatprep.subr.mxu0 0.0
    %362 = vmatpush1.msra.mxu0 %v103
    %363 = vmatprep.subr.mxu0 0.0
    %364 = vmatpush1.msra.mxu0 %v104
    %365 = vmatprep.subr.mxu0 0.0
    %366 = vmatpush1.msra.mxu0 %v105
    %367 = vmatprep.subr.mxu0 0.0
    %368 = vmatpush1.msra.mxu0 %v106
    %369 = vmatprep.subr.mxu0 0.0
    %370 = vmatpush1.msra.mxu0 %v107
    %371 = vmatprep.subr.mxu0 0.0
    %372 = vmatpush1.msra.mxu0 %v108
    %373 = vmatprep.subr.mxu0 0.0
    %374 = vmatpush1.msra.mxu0 %v109
    %375 = vmatprep.subr.mxu0 0.0
    %376 = vmatpush1.msra.mxu0 %v110
    %377 = vmatprep.subr.mxu0 0.0
    %378 = vmatpush1.msra.mxu0 %v111
    %379 = vmatprep.subr.mxu0 0.0
    %380 = vmatpush1.msra.mxu0 %v112
    %381 = vmatprep.subr.mxu0 0.0
    %382 = vmatpush1.msra.mxu0 %v113
    %383 = vmatprep.subr.mxu0 0.0
    %384 = vmatpush1.msra.mxu0 %v114
    %385 = vmatprep.subr.mxu0 0.0
    %386 = vmatpush1.msra.mxu0 %v115
    %387 = vmatprep.subr.mxu0 0.0
    %388 = vmatpush1.msra.mxu0 %v116
    %389 = vmatprep.subr.mxu0 0.0
    %390 = vmatpush1.msra.mxu0 %v117
    %391 = vmatprep.subr.mxu0 0.0
    %392 = vmatpush1.msra.mxu0 %v118
    %393 = vmatprep.subr.mxu0 0.0
    %394 = vmatpush1.msra.mxu0 %v119
    %395 = vmatprep.subr.mxu0 0.0
    %396 = vmatpush1.msra.mxu0 %v120
    %397 = vmatprep.subr.mxu0 0.0
    %398 = vmatpush1.msra.mxu0 %v121
    %399 = vmatprep.subr.mxu0 0.0
    %400 = vmatpush1.msra.mxu0 %v122
    %401 = vmatprep.subr.mxu0 0.0
    %402 = vmatpush1.msra.mxu0 %v123
    %403 = vmatprep.subr.mxu0 0.0
    %404 = vmatpush1.msra.mxu0 %v124
    %405 = vmatprep.mubr.f32.mxu0 %v191
    %406 = vmatmul.mubr.f32.gmra.mrb[0].mxu0 %v183
    %v407 = vpop.f32.mrb[0].mxu0
    %v408 = vadd.f32 %v338, %v407
    %v409 = vpop.f32.mrb[0].mxu0
    %410 = vdwg.mxu0
    %411 = vmatprep.subr.mxu0 0.0
    %412 = vmatpush1.msra.mxu0 %v125
    %413 = vmatprep.subr.mxu0 0.0
    %414 = vmatpush1.msra.mxu0 %v126
    %415 = vmatprep.subr.mxu0 0.0
    %416 = vmatpush1.msra.mxu0 %v127
    %417 = vmatprep.subr.mxu0 0.0
    %418 = vmatpush1.msra.mxu0 %v128
    %419 = vmatprep.subr.mxu0 0.0
    %420 = vmatpush1.msra.mxu0 %v129
    %421 = vmatprep.subr.mxu0 0.0
    %422 = vmatpush1.msra.mxu0 %v130
    %423 = vmatprep.subr.mxu0 0.0
    %424 = vmatpush1.msra.mxu0 %v131
    %425 = vmatprep.subr.mxu0 0.0
    %426 = vmatpush1.msra.mxu0 %v132
    %427 = vmatprep.subr.mxu0 0.0
    %428 = vmatpush1.msra.mxu0 %v133
    %429 = vmatprep.subr.mxu0 0.0
    %430 = vmatpush1.msra.mxu0 %v134
    %431 = vmatprep.subr.mxu0 0.0
    %432 = vmatpush1.msra.mxu0 %v135
    %433 = vmatprep.subr.mxu0 0.0
    %434 = vmatpush1.msra.mxu0 %v136
    %435 = vmatprep.subr.mxu0 0.0
    %436 = vmatpush1.msra.mxu0 %v137
    %437 = vmatprep.subr.mxu0 0.0
    %438 = vmatpush1.msra.mxu0 %v138
    %439 = vmatprep.subr.mxu0 0.0
    %440 = vmatpush1.msra.mxu0 %v139
    %441 = vmatprep.subr.mxu0 0.0
    %442 = vmatpush1.msra.mxu0 %v140
    %443 = vmatprep.subr.mxu0 0.0
    %444 = vmatpush1.msra.mxu0 %v141
    %445 = vmatprep.subr.mxu0 0.0
    %446 = vmatpush1.msra.mxu0 %v142
    %447 = vmatprep.subr.mxu0 0.0
    %448 = vmatpush1.msra.mxu0 %v143
    %449 = vmatprep.subr.mxu0 0.0
    %450 = vmatpush1.msra.mxu0 %v144
    %451 = vmatprep.subr.mxu0 0.0
    %452 = vmatpush1.msra.mxu0 %v145
    %453 = vmatprep.subr.mxu0 0.0
    %454 = vmatpush1.msra.mxu0 %v146
    %455 = vmatprep.subr.mxu0 0.0
    %456 = vmatpush1.msra.mxu0 %v147
    %457 = vmatprep.subr.mxu0 0.0
    %458 = vmatpush1.msra.mxu0 %v148
    %459 = vmatprep.subr.mxu0 0.0
    %460 = vmatpush1.msra.mxu0 %v149
    %461 = vmatprep.subr.mxu0 0.0
    %462 = vmatpush1.msra.mxu0 %v150
    %463 = vmatprep.subr.mxu0 0.0
    %464 = vmatpush1.msra.mxu0 %v151
    %465 = vmatprep.subr.mxu0 0.0
    %466 = vmatpush1.msra.mxu0 %v152
    %467 = vmatprep.subr.mxu0 0.0
    %468 = vmatpush1.msra.mxu0 %v153
    %469 = vmatprep.subr.mxu0 0.0
    %470 = vmatpush1.msra.mxu0 %v154
    %471 = vmatprep.subr.mxu0 0.0
    %472 = vmatpush1.msra.mxu0 %v155
    %473 = vmatprep.subr.mxu0 0.0
    %474 = vmatpush1.msra.mxu0 %v156
    %475 = vmatprep.mubr.f32.mxu0 %v192
    %476 = vmatmul.mubr.f32.gmra.mrb[0].mxu0 %v190
    %v477 = vpop.f32.mrb[0].mxu0
    %v478 = vadd.f32 %v408, %v477
    %v479 = vpop.f32.mrb[0].mxu0
    %480 = vdwg.mxu0
    %v481 = vld [vmem:[%s3] sm:$0xff]
    %v482 = vld [vmem:[%s3 + $0x8] sm:$0xff]
    %v483 = vld [vmem:[%s4] sm:$0x1]
    %v485 = vlaneseq
    %v486 = vshrl.u32 %v485, 7
    %v487 = vsub.s32 0, %v486
    %v488 = vrot.slane %v483, %v487
    %vm490 = vcmask 130048
    %v492 = vsel %vm490, %v478, 0
    %494 = vmatprep.subr.mxu0 0.0
    %495 = vmatpush1.msra.mxu0 %v481
    %496 = vmatprep.subr.mxu0 0.0
    %497 = vmatpush1.msra.mxu0 %v482
    %498 = vmatprep.subr.mxu0 0.0
    %499 = vmatpush1.msra.mxu0 0.0
    %500 = vmatprep.subr.mxu0 0.0
    %501 = vmatpush1.msra.mxu0 0.0
    %502 = vmatprep.subr.mxu0 0.0
    %503 = vmatpush1.msra.mxu0 0.0
    %504 = vmatprep.subr.mxu0 0.0
    %505 = vmatpush1.msra.mxu0 0.0
    %506 = vmatprep.subr.mxu0 0.0
    %507 = vmatpush1.msra.mxu0 0.0
    %508 = vmatprep.subr.mxu0 0.0
    %509 = vmatpush1.msra.mxu0 0.0
    %510 = vmatprep.subr.mxu0 0.0
    %511 = vmatpush1.msra.mxu0 0.0
    %512 = vmatprep.subr.mxu0 0.0
    %513 = vmatpush1.msra.mxu0 0.0
    %514 = vmatprep.subr.mxu0 0.0
    %515 = vmatpush1.msra.mxu0 0.0
    %516 = vmatprep.subr.mxu0 0.0
    %517 = vmatpush1.msra.mxu0 0.0
    %518 = vmatprep.subr.mxu0 0.0
    %519 = vmatpush1.msra.mxu0 0.0
    %520 = vmatprep.subr.mxu0 0.0
    %521 = vmatpush1.msra.mxu0 0.0
    %522 = vmatprep.subr.mxu0 0.0
    %523 = vmatpush1.msra.mxu0 0.0
    %524 = vmatprep.subr.mxu0 0.0
    %525 = vmatpush1.msra.mxu0 0.0
    %526 = vmatprep.subr.mxu0 0.0
    %527 = vmatpush1.msra.mxu0 0.0
    %528 = vmatprep.subr.mxu0 0.0
    %529 = vmatpush1.msra.mxu0 0.0
    %530 = vmatprep.subr.mxu0 0.0
    %531 = vmatpush1.msra.mxu0 0.0
    %532 = vmatprep.subr.mxu0 0.0
    %533 = vmatpush1.msra.mxu0 0.0
    %534 = vmatprep.subr.mxu0 0.0
    %535 = vmatpush1.msra.mxu0 0.0
    %536 = vmatprep.subr.mxu0 0.0
    %537 = vmatpush1.msra.mxu0 0.0
    %538 = vmatprep.subr.mxu0 0.0
    %539 = vmatpush1.msra.mxu0 0.0
    %540 = vmatprep.subr.mxu0 0.0
    %541 = vmatpush1.msra.mxu0 0.0
    %542 = vmatprep.subr.mxu0 0.0
    %543 = vmatpush1.msra.mxu0 0.0
    %544 = vmatprep.subr.mxu0 0.0
    %545 = vmatpush1.msra.mxu0 0.0
    %546 = vmatprep.subr.mxu0 0.0
    %547 = vmatpush1.msra.mxu0 0.0
    %548 = vmatprep.subr.mxu0 0.0
    %549 = vmatpush1.msra.mxu0 0.0
    %550 = vmatprep.subr.mxu0 0.0
    %551 = vmatpush1.msra.mxu0 0.0
    %552 = vmatprep.subr.mxu0 0.0
    %553 = vmatpush1.msra.mxu0 0.0
    %554 = vmatprep.subr.mxu0 0.0
    %555 = vmatpush1.msra.mxu0 0.0
    %556 = vmatprep.subr.mxu0 0.0
    %557 = vmatpush1.msra.mxu0 0.0
    %558 = vmatprep.mubr.f32.mxu0 0.0
    %559 = vmatmul.mubr.f32.gmra.mrb[0].mxu0 %v492
    %v560 = vpop.f32.mrb[0].mxu0
    %v561 = vadd.f32 %v488, %v560
    %v562 = vpop.f32.mrb[0].mxu0
    %563 = vdwg.mxu0
    %v564 = vmax.f32 %v561, 0.0
    %v565 = vld [vmem:[%s5] sm:$0xff]
    %v566 = vld [vmem:[%s6] sm:$0x1]
    %v568 = vlaneseq
    %v569 = vshrl.u32 %v568, 7
    %v570 = vsub.s32 0, %v569
    %v571 = vrot.slane %v566, %v570
    %vm573 = vcmask 64512
    %v575 = vsel %vm573, %v564, 0
    %577 = vmatprep.subr.mxu0 0.0
    %578 = vmatpush1.msra.mxu0 %v565
    %579 = vmatprep.subr.mxu0 0.0
    %580 = vmatpush1.msra.mxu0 0.0
    %581 = vmatprep.subr.mxu0 0.0
    %582 = vmatpush1.msra.mxu0 0.0
    %583 = vmatprep.subr.mxu0 0.0
    %584 = vmatpush1.msra.mxu0 0.0
    %585 = vmatprep.subr.mxu0 0.0
    %586 = vmatpush1.msra.mxu0 0.0
    %587 = vmatprep.subr.mxu0 0.0
    %588 = vmatpush1.msra.mxu0 0.0
    %589 = vmatprep.subr.mxu0 0.0
    %590 = vmatpush1.msra.mxu0 0.0
    %591 = vmatprep.subr.mxu0 0.0
    %592 = vmatpush1.msra.mxu0 0.0
    %593 = vmatprep.subr.mxu0 0.0
    %594 = vmatpush1.msra.mxu0 0.0
    %595 = vmatprep.subr.mxu0 0.0
    %596 = vmatpush1.msra.mxu0 0.0
    %597 = vmatprep.subr.mxu0 0.0
    %598 = vmatpush1.msra.mxu0 0.0
    %599 = vmatprep.subr.mxu0 0.0
    %600 = vmatpush1.msra.mxu0 0.0
    %601 = vmatprep.subr.mxu0 0.0
    %602 = vmatpush1.msra.mxu0 0.0
    %603 = vmatprep.subr.mxu0 0.0
    %604 = vmatpush1.msra.mxu0 0.0
    %605 = vmatprep.subr.mxu0 0.0
    %606 = vmatpush1.msra.mxu0 0.0
    %607 = vmatprep.subr.mxu0 0.0
    %608 = vmatpush1.msra.mxu0 0.0
    %609 = vmatprep.subr.mxu0 0.0
    %610 = vmatpush1.msra.mxu0 0.0
    %611 = vmatprep.subr.mxu0 0.0
    %612 = vmatpush1.msra.mxu0 0.0
    %613 = vmatprep.subr.mxu0 0.0
    %614 = vmatpush1.msra.mxu0 0.0
    %615 = vmatprep.subr.mxu0 0.0
    %616 = vmatpush1.msra.mxu0 0.0
    %617 = vmatprep.subr.mxu0 0.0
    %618 = vmatpush1.msra.mxu0 0.0
    %619 = vmatprep.subr.mxu0 0.0
    %620 = vmatpush1.msra.mxu0 0.0
    %621 = vmatprep.subr.mxu0 0.0
    %622 = vmatpush1.msra.mxu0 0.0
    %623 = vmatprep.subr.mxu0 0.0
    %624 = vmatpush1.msra.mxu0 0.0
    %625 = vmatprep.subr.mxu0 0.0
    %626 = vmatpush1.msra.mxu0 0.0
    %627 = vmatprep.subr.mxu0 0.0
    %628 = vmatpush1.msra.mxu0 0.0
    %629 = vmatprep.subr.mxu0 0.0
    %630 = vmatpush1.msra.mxu0 0.0
    %631 = vmatprep.subr.mxu0 0.0
    %632 = vmatpush1.msra.mxu0 0.0
    %633 = vmatprep.subr.mxu0 0.0
    %634 = vmatpush1.msra.mxu0 0.0
    %635 = vmatprep.subr.mxu0 0.0
    %636 = vmatpush1.msra.mxu0 0.0
    %637 = vmatprep.subr.mxu0 0.0
    %638 = vmatpush1.msra.mxu0 0.0
    %639 = vmatprep.subr.mxu0 0.0
    %640 = vmatpush1.msra.mxu0 0.0
    %641 = vmatprep.mubr.f32.mxu0 0.0
    %642 = vmatmul.mubr.f32.gmra.mrb[0].mxu0 %v575
    %v643 = vpop.f32.mrb[0].mxu0
    %v644 = vadd.f32 %v571, %v643
    %v645 = vpop.f32.mrb[0].mxu0
    %646 = vdwg.mxu0
    %v647 = vmul.f32 %v644, 0.16666667
    %v648 = vadd.f32 %v647, 0.5
    %v649 = vmax.f32 %v648, 0.0
    %v650 = vmin.f32 %v649, 1.0
    %v651 = vld [vmem:[%s2] sm:$0xff]
    %v652 = vld [vmem:[%s2 + $0x8] sm:$0xff]
    %v653 = vld [vmem:[%s2 + $0x10] sm:$0xff]
    %v654 = vld [vmem:[%s2 + $0x18] sm:$0xff]
    %v655 = vld [vmem:[%s2 + $0x20] sm:$0xff]
    %v656 = vld [vmem:[%s2 + $0x28] sm:$0xff]
    %v657 = vld [vmem:[%s2 + $0x30] sm:$0xff]
    %v658 = vld [vmem:[%s2 + $0x38] sm:$0xff]
    %v659 = vld [vmem:[%s2 + $0x40] sm:$0xff]
    %v660 = vld [vmem:[%s2 + $0x48] sm:$0xff]
    %v661 = vld [vmem:[%s2 + $0x50] sm:$0xff]
    %v662 = vld [vmem:[%s2 + $0x58] sm:$0xff]
    %v663 = vld [vmem:[%s2 + $0x60] sm:$0xff]
    %v664 = vld [vmem:[%s2 + $0x68] sm:$0xff]
    %v665 = vld [vmem:[%s2 + $0x70] sm:$0xff]
    %v666 = vld [vmem:[%s2 + $0x78] sm:$0xff]
    %v668 = vsel %vm490, %v650, 0
    %670 = vmatprep.subr.mxu0 %v652
    %671 = vmatpush1.msra.mxu0 %v651
    %672 = vmatprep.subr.mxu0 %v660
    %673 = vmatpush1.msra.mxu0 %v659
    %674 = vmatprep.subr.mxu0 0.0
    %675 = vmatpush1.msra.mxu0 0.0
    %676 = vmatprep.subr.mxu0 0.0
    %677 = vmatpush1.msra.mxu0 0.0
    %678 = vmatprep.subr.mxu0 0.0
    %679 = vmatpush1.msra.mxu0 0.0
    %680 = vmatprep.subr.mxu0 0.0
    %681 = vmatpush1.msra.mxu0 0.0
    %682 = vmatprep.subr.mxu0 0.0
    %683 = vmatpush1.msra.mxu0 0.0
    %684 = vmatprep.subr.mxu0 0.0
    %685 = vmatpush1.msra.mxu0 0.0
    %686 = vmatprep.subr.mxu0 0.0
    %687 = vmatpush1.msra.mxu0 0.0
    %688 = vmatprep.subr.mxu0 0.0
    %689 = vmatpush1.msra.mxu0 0.0
    %690 = vmatprep.subr.mxu0 0.0
    %691 = vmatpush1.msra.mxu0 0.0
    %692 = vmatprep.subr.mxu0 0.0
    %693 = vmatpush1.msra.mxu0 0.0
    %694 = vmatprep.subr.mxu0 0.0
    %695 = vmatpush1.msra.mxu0 0.0
    %696 = vmatprep.subr.mxu0 0.0
    %697 = vmatpush1.msra.mxu0 0.0
    %698 = vmatprep.subr.mxu0 0.0
    %699 = vmatpush1.msra.mxu0 0.0
    %700 = vmatprep.subr.mxu0 0.0
    %701 = vmatpush1.msra.mxu0 0.0
    %702 = vmatprep.subr.mxu0 0.0
    %703 = vmatpush1.msra.mxu0 0.0
    %704 = vmatprep.subr.mxu0 0.0
    %705 = vmatpush1.msra.mxu0 0.0
    %706 = vmatprep.subr.mxu0 0.0
    %707 = vmatpush1.msra.mxu0 0.0
    %708 = vmatprep.subr.mxu0 0.0
    %709 = vmatpush1.msra.mxu0 0.0
    %710 = vmatprep.subr.mxu0 0.0
    %711 = vmatpush1.msra.mxu0 0.0
    %712 = vmatprep.subr.mxu0 0.0
    %713 = vmatpush1.msra.mxu0 0.0
    %714 = vmatprep.subr.mxu0 0.0
    %715 = vmatpush1.msra.mxu0 0.0
    %716 = vmatprep.subr.mxu0 0.0
    %717 = vmatpush1.msra.mxu0 0.0
    %718 = vmatprep.subr.mxu0 0.0
    %719 = vmatpush1.msra.mxu0 0.0
    %720 = vmatprep.subr.mxu0 0.0
    %721 = vmatpush1.msra.mxu0 0.0
    %722 = vmatprep.subr.mxu0 0.0
    %723 = vmatpush1.msra.mxu0 0.0
    %724 = vmatprep.subr.mxu0 0.0
    %725 = vmatpush1.msra.mxu0 0.0
    %726 = vmatprep.subr.mxu0 0.0
    %727 = vmatpush1.msra.mxu0 0.0
    %728 = vmatprep.subr.mxu0 0.0
    %729 = vmatpush1.msra.mxu0 0.0
    %730 = vmatprep.subr.mxu0 0.0
    %731 = vmatpush1.msra.mxu0 0.0
    %732 = vmatprep.subr.mxu0 0.0
    %733 = vmatpush1.msra.mxu0 0.0
    %734 = vmatprep.mubr.f32.mxu0 0.0
    %735 = vmatmul.mubr.f32.gmra.mrb[0].mxu0 %v668
    %v736 = vpop.f32.mrb[0].mxu0
    %v737 = vadd.f32 0.0, %v736
    %v738 = vpop.f32.mrb[0].mxu0
    %v739 = vadd.f32 0.0, %v738
    %740 = vdwg.mxu0
    %741 = vmatprep.subr.mxu0 %v654
    %742 = vmatpush1.msra.mxu0 %v653
    %743 = vmatprep.subr.mxu0 %v662
    %744 = vmatpush1.msra.mxu0 %v661
    %745 = vmatprep.subr.mxu0 0.0
    %746 = vmatpush1.msra.mxu0 0.0
    %747 = vmatprep.subr.mxu0 0.0
    %748 = vmatpush1.msra.mxu0 0.0
    %749 = vmatprep.subr.mxu0 0.0
    %750 = vmatpush1.msra.mxu0 0.0
    %751 = vmatprep.subr.mxu0 0.0
    %752 = vmatpush1.msra.mxu0 0.0
    %753 = vmatprep.subr.mxu0 0.0
    %754 = vmatpush1.msra.mxu0 0.0
    %755 = vmatprep.subr.mxu0 0.0
    %756 = vmatpush1.msra.mxu0 0.0
    %757 = vmatprep.subr.mxu0 0.0
    %758 = vmatpush1.msra.mxu0 0.0
    %759 = vmatprep.subr.mxu0 0.0
    %760 = vmatpush1.msra.mxu0 0.0
    %761 = vmatprep.subr.mxu0 0.0
    %762 = vmatpush1.msra.mxu0 0.0
    %763 = vmatprep.subr.mxu0 0.0
    %764 = vmatpush1.msra.mxu0 0.0
    %765 = vmatprep.subr.mxu0 0.0
    %766 = vmatpush1.msra.mxu0 0.0
    %767 = vmatprep.subr.mxu0 0.0
    %768 = vmatpush1.msra.mxu0 0.0
    %769 = vmatprep.subr.mxu0 0.0
    %770 = vmatpush1.msra.mxu0 0.0
    %771 = vmatprep.subr.mxu0 0.0
    %772 = vmatpush1.msra.mxu0 0.0
    %773 = vmatprep.subr.mxu0 0.0
    %774 = vmatpush1.msra.mxu0 0.0
    %775 = vmatprep.subr.mxu0 0.0
    %776 = vmatpush1.msra.mxu0 0.0
    %777 = vmatprep.subr.mxu0 0.0
    %778 = vmatpush1.msra.mxu0 0.0
    %779 = vmatprep.subr.mxu0 0.0
    %780 = vmatpush1.msra.mxu0 0.0
    %781 = vmatprep.subr.mxu0 0.0
    %782 = vmatpush1.msra.mxu0 0.0
    %783 = vmatprep.subr.mxu0 0.0
    %784 = vmatpush1.msra.mxu0 0.0
    %785 = vmatprep.subr.mxu0 0.0
    %786 = vmatpush1.msra.mxu0 0.0
    %787 = vmatprep.subr.mxu0 0.0
    %788 = vmatpush1.msra.mxu0 0.0
    %789 = vmatprep.subr.mxu0 0.0
    %790 = vmatpush1.msra.mxu0 0.0
    %791 = vmatprep.subr.mxu0 0.0
    %792 = vmatpush1.msra.mxu0 0.0
    %793 = vmatprep.subr.mxu0 0.0
    %794 = vmatpush1.msra.mxu0 0.0
    %795 = vmatprep.subr.mxu0 0.0
    %796 = vmatpush1.msra.mxu0 0.0
    %797 = vmatprep.subr.mxu0 0.0
    %798 = vmatpush1.msra.mxu0 0.0
    %799 = vmatprep.subr.mxu0 0.0
    %800 = vmatpush1.msra.mxu0 0.0
    %801 = vmatprep.subr.mxu0 0.0
    %802 = vmatpush1.msra.mxu0 0.0
    %803 = vmatprep.subr.mxu0 0.0
    %804 = vmatpush1.msra.mxu0 0.0
    %805 = vmatprep.mubr.f32.mxu0 0.0
    %806 = vmatmul.mubr.f32.gmra.mrb[0].mxu0 %v668
    %v807 = vpop.f32.mrb[0].mxu0
    %v808 = vadd.f32 0.0, %v807
    %v809 = vpop.f32.mrb[0].mxu0
    %v810 = vadd.f32 0.0, %v809
    %811 = vdwg.mxu0
    %812 = vmatprep.subr.mxu0 %v656
    %813 = vmatpush1.msra.mxu0 %v655
    %814 = vmatprep.subr.mxu0 %v664
    %815 = vmatpush1.msra.mxu0 %v663
    %816 = vmatprep.subr.mxu0 0.0
    %817 = vmatpush1.msra.mxu0 0.0
    %818 = vmatprep.subr.mxu0 0.0
    %819 = vmatpush1.msra.mxu0 0.0
    %820 = vmatprep.subr.mxu0 0.0
    %821 = vmatpush1.msra.mxu0 0.0
    %822 = vmatprep.subr.mxu0 0.0
    %823 = vmatpush1.msra.mxu0 0.0
    %824 = vmatprep.subr.mxu0 0.0
    %825 = vmatpush1.msra.mxu0 0.0
    %826 = vmatprep.subr.mxu0 0.0
    %827 = vmatpush1.msra.mxu0 0.0
    %828 = vmatprep.subr.mxu0 0.0
    %829 = vmatpush1.msra.mxu0 0.0
    %830 = vmatprep.subr.mxu0 0.0
    %831 = vmatpush1.msra.mxu0 0.0
    %832 = vmatprep.subr.mxu0 0.0
    %833 = vmatpush1.msra.mxu0 0.0
    %834 = vmatprep.subr.mxu0 0.0
    %835 = vmatpush1.msra.mxu0 0.0
    %836 = vmatprep.subr.mxu0 0.0
    %837 = vmatpush1.msra.mxu0 0.0
    %838 = vmatprep.subr.mxu0 0.0
    %839 = vmatpush1.msra.mxu0 0.0
    %840 = vmatprep.subr.mxu0 0.0
    %841 = vmatpush1.msra.mxu0 0.0
    %842 = vmatprep.subr.mxu0 0.0
    %843 = vmatpush1.msra.mxu0 0.0
    %844 = vmatprep.subr.mxu0 0.0
    %845 = vmatpush1.msra.mxu0 0.0
    %846 = vmatprep.subr.mxu0 0.0
    %847 = vmatpush1.msra.mxu0 0.0
    %848 = vmatprep.subr.mxu0 0.0
    %849 = vmatpush1.msra.mxu0 0.0
    %850 = vmatprep.subr.mxu0 0.0
    %851 = vmatpush1.msra.mxu0 0.0
    %852 = vmatprep.subr.mxu0 0.0
    %853 = vmatpush1.msra.mxu0 0.0
    %854 = vmatprep.subr.mxu0 0.0
    %855 = vmatpush1.msra.mxu0 0.0
    %856 = vmatprep.subr.mxu0 0.0
    %857 = vmatpush1.msra.mxu0 0.0
    %858 = vmatprep.subr.mxu0 0.0
    %859 = vmatpush1.msra.mxu0 0.0
    %860 = vmatprep.subr.mxu0 0.0
    %861 = vmatpush1.msra.mxu0 0.0
    %862 = vmatprep.subr.mxu0 0.0
    %863 = vmatpush1.msra.mxu0 0.0
    %864 = vmatprep.subr.mxu0 0.0
    %865 = vmatpush1.msra.mxu0 0.0
    %866 = vmatprep.subr.mxu0 0.0
    %867 = vmatpush1.msra.mxu0 0.0
    %868 = vmatprep.subr.mxu0 0.0
    %869 = vmatpush1.msra.mxu0 0.0
    %870 = vmatprep.subr.mxu0 0.0
    %871 = vmatpush1.msra.mxu0 0.0
    %872 = vmatprep.subr.mxu0 0.0
    %873 = vmatpush1.msra.mxu0 0.0
    %874 = vmatprep.subr.mxu0 0.0
    %875 = vmatpush1.msra.mxu0 0.0
    %876 = vmatprep.mubr.f32.mxu0 0.0
    %877 = vmatmul.mubr.f32.gmra.mrb[0].mxu0 %v668
    %v878 = vpop.f32.mrb[0].mxu0
    %v879 = vadd.f32 0.0, %v878
    %v880 = vpop.f32.mrb[0].mxu0
    %v881 = vadd.f32 0.0, %v880
    %882 = vdwg.mxu0
    %883 = vmatprep.subr.mxu0 %v658
    %884 = vmatpush1.msra.mxu0 %v657
    %885 = vmatprep.subr.mxu0 %v666
    %886 = vmatpush1.msra.mxu0 %v665
    %887 = vmatprep.subr.mxu0 0.0
    %888 = vmatpush1.msra.mxu0 0.0
    %889 = vmatprep.subr.mxu0 0.0
    %890 = vmatpush1.msra.mxu0 0.0
    %891 = vmatprep.subr.mxu0 0.0
    %892 = vmatpush1.msra.mxu0 0.0
    %893 = vmatprep.subr.mxu0 0.0
    %894 = vmatpush1.msra.mxu0 0.0
    %895 = vmatprep.subr.mxu0 0.0
    %896 = vmatpush1.msra.mxu0 0.0
    %897 = vmatprep.subr.mxu0 0.0
    %898 = vmatpush1.msra.mxu0 0.0
    %899 = vmatprep.subr.mxu0 0.0
    %900 = vmatpush1.msra.mxu0 0.0
    %901 = vmatprep.subr.mxu0 0.0
    %902 = vmatpush1.msra.mxu0 0.0
    %903 = vmatprep.subr.mxu0 0.0
    %904 = vmatpush1.msra.mxu0 0.0
    %905 = vmatprep.subr.mxu0 0.0
    %906 = vmatpush1.msra.mxu0 0.0
    %907 = vmatprep.subr.mxu0 0.0
    %908 = vmatpush1.msra.mxu0 0.0
    %909 = vmatprep.subr.mxu0 0.0
    %910 = vmatpush1.msra.mxu0 0.0
    %911 = vmatprep.subr.mxu0 0.0
    %912 = vmatpush1.msra.mxu0 0.0
    %913 = vmatprep.subr.mxu0 0.0
    %914 = vmatpush1.msra.mxu0 0.0
    %915 = vmatprep.subr.mxu0 0.0
    %916 = vmatpush1.msra.mxu0 0.0
    %917 = vmatprep.subr.mxu0 0.0
    %918 = vmatpush1.msra.mxu0 0.0
    %919 = vmatprep.subr.mxu0 0.0
    %920 = vmatpush1.msra.mxu0 0.0
    %921 = vmatprep.subr.mxu0 0.0
    %922 = vmatpush1.msra.mxu0 0.0
    %923 = vmatprep.subr.mxu0 0.0
    %924 = vmatpush1.msra.mxu0 0.0
    %925 = vmatprep.subr.mxu0 0.0
    %926 = vmatpush1.msra.mxu0 0.0
    %927 = vmatprep.subr.mxu0 0.0
    %928 = vmatpush1.msra.mxu0 0.0
    %929 = vmatprep.subr.mxu0 0.0
    %930 = vmatpush1.msra.mxu0 0.0
    %931 = vmatprep.subr.mxu0 0.0
    %932 = vmatpush1.msra.mxu0 0.0
    %933 = vmatprep.subr.mxu0 0.0
    %934 = vmatpush1.msra.mxu0 0.0
    %935 = vmatprep.subr.mxu0 0.0
    %936 = vmatpush1.msra.mxu0 0.0
    %937 = vmatprep.subr.mxu0 0.0
    %938 = vmatpush1.msra.mxu0 0.0
    %939 = vmatprep.subr.mxu0 0.0
    %940 = vmatpush1.msra.mxu0 0.0
    %941 = vmatprep.subr.mxu0 0.0
    %942 = vmatpush1.msra.mxu0 0.0
    %943 = vmatprep.subr.mxu0 0.0
    %944 = vmatpush1.msra.mxu0 0.0
    %945 = vmatprep.subr.mxu0 0.0
    %946 = vmatpush1.msra.mxu0 0.0
    %947 = vmatprep.mubr.f32.mxu0 0.0
    %948 = vmatmul.mubr.f32.gmra.mrb[0].mxu0 %v668
    %v949 = vpop.f32.mrb[0].mxu0
    %v950 = vadd.f32 0.0, %v949
    %v951 = vpop.f32.mrb[0].mxu0
    %v952 = vadd.f32 0.0, %v951
    %953 = vdwg.mxu0
    %v954 = vmul.f32 %v737, %v166
    %v955 = vmul.f32 %v739, %v174
    %v956 = vmul.f32 %v808, %v173
    %v957 = vmul.f32 %v810, %v175
    %v958 = vmul.f32 %v879, %v183
    %v959 = vmul.f32 %v881, %v191
    %v960 = vmul.f32 %v950, %v190
    %v961 = vmul.f32 %v952, %v192
    %v970 = vcombine.low %v954, %v955
    %v971 = vcombine.low %v956, %v957
    %v973 = vunpack.c.l.s4 1983009808
    %v974 = vunpack.c.0.s8 %v973
    %v975 = vlaneseq
    %v976 = vshrl.u32 %v975, 7
    %v977 = vsub.s32 %v974, %v976
    %v978 = vrot.slane %v970, %v977
    %v980 = vunpack.c.l.s4 1983009808
    %v981 = vunpack.c.0.s8 %v980
    %v982 = vlaneseq
    %v983 = vshrl.u32 %v982, 7
    %v984 = vsub.s32 %v981, %v983
    %v985 = vrot.slane %v971, %v984
    %v986 = vcombine.low %v978, %v985
    %v987 = vcombine.low %v958, %v959
    %v988 = vcombine.low %v960, %v961
    %v990 = vunpack.c.l.s4 1983009808
    %v991 = vunpack.c.0.s8 %v990
    %v992 = vlaneseq
    %v993 = vshrl.u32 %v992, 7
    %v994 = vsub.s32 %v991, %v993
    %v995 = vrot.slane %v987, %v994
    %v997 = vunpack.c.l.s4 1983009808
    %v998 = vunpack.c.0.s8 %v997
    %v999 = vlaneseq
    %v1000 = vshrl.u32 %v999, 7
    %v1001 = vsub.s32 %v998, %v1000
    %v1002 = vrot.slane %v988, %v1001
    %v1003 = vcombine.low %v995, %v1002
    %1006 = vst [vmem:[#allocation2] sm:$0xff] %v986
    %1007 = vst [vmem:[#allocation2 + $0x8] sm:$0xff] %v1003
    // Predicated region
    $region30: #{tpu_custom_call.1} parent=1 // pred_check
      _
    $region31: #{tpu_custom_call.1} parent=1 // pred_check_branch
      %1009 = sbr.rel (0) target = $region33
    $region32: #{tpu_custom_call.1} parent=1 // pred_region
      %s1011 = ssub.s32 256, 256
      %1012 = vsyncadd [#allocation3], %s1011
      %s1014 = sshll.u32 [#allocation2], 4
      %s1015 = int_to_ptr.vmem [resolvable:$true] %s1014
      %1017 = dma.vmem_to_hbm [thread:$0]  %s1015, 256, %s7, [#allocation3]
    $region33: #{tpu_custom_call.1} parent=1 // pred_fallthru
      _
    // Predicated region
    $region34: #{tpu_custom_call.1} parent=1 // pred_check
      _
    $region35: #{tpu_custom_call.1} parent=1 // pred_check_branch
      %1019 = sbr.rel (0) target = $region37
    $region36: #{tpu_custom_call.1} parent=1 // pred_region
      %1020 = dma.done [#allocation3], 256
    $region37: #{tpu_custom_call.1} parent=1 // pred_fallthru
      _
    %1021 = vsyncpa [#allocation3], 1

</llo_original>
